<compile_context>
chip_gen: v7x
topology: tpu7x:2x2x1
jax: 0.10.0
libtpu: 0.0.40
codegen_flags: <defaults>
</compile_context>

<pallas_src>
import functools
import math

import jax
import jax.numpy as jnp
from jax.experimental import pallas as pl
from jax.experimental.pallas import tpu as pltpu

_LANE = 128
_SUBLANE = 8


def _dice_kernel(p_ref, g_ref, out_ref, acc_pg, acc_p, acc_g, *,
                 n, eps, beta, needs_mask):
    i = pl.program_id(0)
    t, lane = p_ref.shape

    @pl.when(i == 0)
    def _():
        acc_pg[...] = jnp.zeros_like(acc_pg)
        acc_p[...] = jnp.zeros_like(acc_p)
        acc_g[...] = jnp.zeros_like(acc_g)

    x = p_ref[...].astype(jnp.float32)
    g = g_ref[...].astype(jnp.float32)
    # sigmoid(x) == 0.5 * tanh(0.5 * x) + 0.5  (single EUP op per element)
    p = 0.5 * jnp.tanh(0.5 * x) + 0.5

    if needs_mask:
        # Mask out-of-range elements (ragged tail / partial trailing block).
        row = jax.lax.broadcasted_iota(jnp.int32, (t, lane), 0)
        col = jax.lax.broadcasted_iota(jnp.int32, (t, lane), 1)
        flat = (i * t + row) * lane + col
        valid = flat < n
        p = jnp.where(valid, p, 0.0)
        g = jnp.where(valid, g, 0.0)

    # Fold the (t, 128) tile onto (8, 128) vreg accumulators with pure VPU
    # adds; the cross-lane reduction happens only once, in the epilogue.
    acc_pg[...] += jnp.sum((p * g).reshape(t // _SUBLANE, _SUBLANE, lane), axis=0)
    acc_p[...] += jnp.sum(p.reshape(t // _SUBLANE, _SUBLANE, lane), axis=0)
    acc_g[...] += jnp.sum(g.reshape(t // _SUBLANE, _SUBLANE, lane), axis=0)

    @pl.when(i == pl.num_programs(0) - 1)
    def _():
        inter = jnp.sum(acc_pg[...])
        sum_p = jnp.sum(acc_p[...])
        sum_g = jnp.sum(acc_g[...])
        fp = sum_p - inter           # sum(p * (1 - g))
        fn = sum_g - inter           # sum((1 - p) * g)
        beta2 = beta * beta
        numerator = (1.0 + beta2) * inter + eps
        denominator = (1.0 + beta2) * inter + beta2 * fn + fp + eps
        out_ref[0, 0] = 1.0 - numerator / denominator


def dice_loss_c(y_pr, y_gt, *, eps=1e-6, beta=1.0, tile_rows=1024):
    """Equivalent of DiceLossC(activation='sigmoid')(y_pr, y_gt). Returns f32 scalar."""
    lane = _LANE
    n = math.prod(y_pr.shape)

    p_flat = jnp.reshape(y_pr, (-1,))
    g_flat = jnp.reshape(y_gt, (-1,))

    # (rows, 128) view of the flat vector. When n is lane-aligned (typical for
    # segmentation tensors) this is a free reshape of a contiguous buffer; we
    # only pay a copy-pad in the rare ragged / tiny case.
    rows = max(pl.cdiv(n, lane), _SUBLANE)
    padded_n = rows * lane
    if padded_n != n:
        pad = padded_n - n
        p_flat = jnp.pad(p_flat, (0, pad))
        g_flat = jnp.pad(g_flat, (0, pad))
    p2 = p_flat.reshape(rows, lane)
    g2 = g_flat.reshape(rows, lane)

    # Adaptive tile: big blocks for big tensors, whole array for small ones.
    t = min(int(tile_rows), (rows // _SUBLANE) * _SUBLANE)
    t = max(t, _SUBLANE)
    grid = pl.cdiv(rows, t)
    # Mask needed whenever the last block reaches past the n valid elements
    # (partial trailing block and/or padded tail).
    needs_mask = (grid * t * lane != n)

    kernel = functools.partial(
        _dice_kernel, n=n, eps=float(eps), beta=float(beta), needs_mask=needs_mask
    )

    out = pl.pallas_call(
        kernel,
        out_shape=jax.ShapeDtypeStruct((1, 1), jnp.float32),
        grid_spec=pltpu.PrefetchScalarGridSpec(
            num_scalar_prefetch=0,
            grid=(grid,),
            in_specs=[
                pl.BlockSpec((t, lane), lambda i: (i, 0)),
                pl.BlockSpec((t, lane), lambda i: (i, 0)),
            ],
            out_specs=pl.BlockSpec(
                (1, 1), lambda i: (0, 0), memory_space=pltpu.SMEM
            ),
            scratch_shapes=[
                pltpu.VMEM((_SUBLANE, lane), jnp.float32),  # acc_pg
                pltpu.VMEM((_SUBLANE, lane), jnp.float32),  # acc_p
                pltpu.VMEM((_SUBLANE, lane), jnp.float32),  # acc_g
            ],
        ),
        compiler_params=pltpu.CompilerParams(
            dimension_semantics=("arbitrary",),
        ),
    )(p2, g2)
    return out[0, 0]


def _reference(y_pr, y_gt, eps=1e-6, beta=1.0):
    p = jax.nn.sigmoid(y_pr.astype(jnp.float32)).reshape(-1)
    g = y_gt.astype(jnp.float32).reshape(-1)
    inter = jnp.sum(p * g)
    fp = jnp.sum(p * (1.0 - g))
    fn = jnp.sum((1.0 - p) * g)
    num = (1.0 + beta**2) * inter + eps
    den = (1.0 + beta**2) * inter + beta**2 * fn + fp + eps
    return 1.0 - num / den


if __name__ == "__main__":
    key = jax.random.PRNGKey(0)
    k1, k2, k3, k4 = jax.random.split(key, 4)

    # NCHW logits and binary ground-truth masks, like the segmentation use-case.
    y_pr = jax.random.normal(k1, (2, 4, 16, 16), dtype=jnp.float32)
    y_gt = (jax.random.uniform(k2, (2, 4, 16, 16)) > 0.5).astype(jnp.float32)
    loss = jax.block_until_ready(dice_loss_c(y_pr, y_gt))
    ref = jax.block_until_ready(_reference(y_pr, y_gt))
    assert jnp.allclose(loss, ref, rtol=1e-5, atol=1e-6), (loss, ref)

    # A second, non-tile-aligned shape to exercise the in-kernel tail masking.
    y_pr2 = jax.random.normal(k3, (2, 4, 16, 18), dtype=jnp.float32)
    y_gt2 = (jax.random.uniform(k4, (2, 4, 16, 18)) > 0.5).astype(jnp.float32)
    loss2 = jax.block_until_ready(dice_loss_c(y_pr2, y_gt2))
    ref2 = jax.block_until_ready(_reference(y_pr2, y_gt2))
    assert jnp.allclose(loss2, ref2, rtol=1e-5, atol=1e-6), (loss2, ref2)

    print("KERNEL_OK")
</pallas_src>

<mosaic_0001>
module attributes {stable_mosaic.version = 11 : i64} {
  func.func @_dice_kernel(%arg0: i32, %arg1: memref<16x128xf32, #tpu.memory_space<vmem>>, %arg2: memref<16x128xf32, #tpu.memory_space<vmem>>, %arg3: memref<1x1xf32, #tpu.memory_space<smem>>, %arg4: memref<8x128xf32, #tpu.memory_space<vmem>>, %arg5: memref<8x128xf32, #tpu.memory_space<vmem>>, %arg6: memref<8x128xf32, #tpu.memory_space<vmem>>) attributes {dimension_semantics = [#tpu.dimension_semantics<arbitrary>], iteration_bounds = array<i64: 1>, scalar_prefetch = 0 : i64, scratch_operands = 3 : i64, tpu.core_type = #tpu.core_type<tc>, window_params = [{transform_indices = @transform_0, window_bounds = array<i64: 16, 128>}, {transform_indices = @transform_1, window_bounds = array<i64: 16, 128>}, {transform_indices = @transform_2, window_bounds = array<i64: 1, 1>}]} {
    %c0_i32 = arith.constant 0 : i32
    %0 = arith.cmpi eq, %arg0, %c0_i32 : i32
    %1 = arith.extui %0 : i1 to i32
    %c0_i32_0 = arith.constant 0 : i32
    %2 = arith.cmpi ne, %1, %c0_i32_0 : i32
    scf.if %2 {
      %cst_23 = arith.constant 0.000000e+00 : f32
      %31 = vector.broadcast %cst_23 : f32 to vector<8x128xf32>
      %c0_24 = arith.constant 0 : index
      %c0_25 = arith.constant 0 : index
      %32 = vector.load %arg4[%c0_24, %c0_25] : memref<8x128xf32, #tpu.memory_space<vmem>>, vector<8x128xf32>
      tpu.vector_store %arg4[%c0_24, %c0_25], %31 {strides = array<i32>} : memref<8x128xf32, #tpu.memory_space<vmem>>, vector<8x128xf32>,
      %cst_26 = arith.constant 0.000000e+00 : f32
      %33 = vector.broadcast %cst_26 : f32 to vector<8x128xf32>
      %c0_27 = arith.constant 0 : index
      %c0_28 = arith.constant 0 : index
      %34 = vector.load %arg5[%c0_27, %c0_28] : memref<8x128xf32, #tpu.memory_space<vmem>>, vector<8x128xf32>
      tpu.vector_store %arg5[%c0_27, %c0_28], %33 {strides = array<i32>} : memref<8x128xf32, #tpu.memory_space<vmem>>, vector<8x128xf32>,
      %cst_29 = arith.constant 0.000000e+00 : f32
      %35 = vector.broadcast %cst_29 : f32 to vector<8x128xf32>
      %c0_30 = arith.constant 0 : index
      %c0_31 = arith.constant 0 : index
      %36 = vector.load %arg6[%c0_30, %c0_31] : memref<8x128xf32, #tpu.memory_space<vmem>>, vector<8x128xf32>
      tpu.vector_store %arg6[%c0_30, %c0_31], %35 {strides = array<i32>} : memref<8x128xf32, #tpu.memory_space<vmem>>, vector<8x128xf32>,
    } else {
    }
    %c0 = arith.constant 0 : index
    %c0_1 = arith.constant 0 : index
    %3 = vector.load %arg1[%c0, %c0_1] : memref<16x128xf32, #tpu.memory_space<vmem>>, vector<16x128xf32>
    %c0_2 = arith.constant 0 : index
    %c0_3 = arith.constant 0 : index
    %4 = vector.load %arg2[%c0_2, %c0_3] : memref<16x128xf32, #tpu.memory_space<vmem>>, vector<16x128xf32>
    %cst = arith.constant 5.000000e-01 : f32
    %5 = vector.broadcast %cst : f32 to vector<16x128xf32>
    %6 = arith.mulf %5, %3 : vector<16x128xf32>
    %7 = math.tanh %6 : vector<16x128xf32>
    %cst_4 = arith.constant 5.000000e-01 : f32
    %8 = vector.broadcast %cst_4 : f32 to vector<16x128xf32>
    %9 = arith.mulf %8, %7 : vector<16x128xf32>
    %cst_5 = arith.constant 5.000000e-01 : f32
    %10 = vector.broadcast %cst_5 : f32 to vector<16x128xf32>
    %11 = arith.addf %9, %10 : vector<16x128xf32>
    %c0_6 = arith.constant 0 : index
    %c0_7 = arith.constant 0 : index
    %12 = vector.load %arg4[%c0_6, %c0_7] : memref<8x128xf32, #tpu.memory_space<vmem>>, vector<8x128xf32>
    %13 = arith.mulf %11, %4 : vector<16x128xf32>
    %14 = vector.shape_cast %13 : vector<16x128xf32> to vector<2x8x128xf32>
    %cst_8 = arith.constant dense<0.000000e+00> : vector<8x128xf32>
    %15 = vector.multi_reduction <add>, %14, %cst_8 [0] : vector<2x8x128xf32> to vector<8x128xf32>
    %16 = arith.addf %12, %15 : vector<8x128xf32>
    %c0_9 = arith.constant 0 : index
    %c0_10 = arith.constant 0 : index
    %17 = vector.load %arg4[%c0_9, %c0_10] : memref<8x128xf32, #tpu.memory_space<vmem>>, vector<8x128xf32>
    tpu.vector_store %arg4[%c0_9, %c0_10], %16 {strides = array<i32>} : memref<8x128xf32, #tpu.memory_space<vmem>>, vector<8x128xf32>,
    %c0_11 = arith.constant 0 : index
    %c0_12 = arith.constant 0 : index
    %18 = vector.load %arg5[%c0_11, %c0_12] : memref<8x128xf32, #tpu.memory_space<vmem>>, vector<8x128xf32>
    %19 = vector.shape_cast %11 : vector<16x128xf32> to vector<2x8x128xf32>
    %cst_13 = arith.constant dense<0.000000e+00> : vector<8x128xf32>
    %20 = vector.multi_reduction <add>, %19, %cst_13 [0] : vector<2x8x128xf32> to vector<8x128xf32>
    %21 = arith.addf %18, %20 : vector<8x128xf32>
    %c0_14 = arith.constant 0 : index
    %c0_15 = arith.constant 0 : index
    %22 = vector.load %arg5[%c0_14, %c0_15] : memref<8x128xf32, #tpu.memory_space<vmem>>, vector<8x128xf32>
    tpu.vector_store %arg5[%c0_14, %c0_15], %21 {strides = array<i32>} : memref<8x128xf32, #tpu.memory_space<vmem>>, vector<8x128xf32>,
    %c0_16 = arith.constant 0 : index
    %c0_17 = arith.constant 0 : index
    %23 = vector.load %arg6[%c0_16, %c0_17] : memref<8x128xf32, #tpu.memory_space<vmem>>, vector<8x128xf32>
    %24 = vector.shape_cast %4 : vector<16x128xf32> to vector<2x8x128xf32>
    %cst_18 = arith.constant dense<0.000000e+00> : vector<8x128xf32>
    %25 = vector.multi_reduction <add>, %24, %cst_18 [0] : vector<2x8x128xf32> to vector<8x128xf32>
    %26 = arith.addf %23, %25 : vector<8x128xf32>
    %c0_19 = arith.constant 0 : index
    %c0_20 = arith.constant 0 : index
    %27 = vector.load %arg6[%c0_19, %c0_20] : memref<8x128xf32, #tpu.memory_space<vmem>>, vector<8x128xf32>
    tpu.vector_store %arg6[%c0_19, %c0_20], %26 {strides = array<i32>} : memref<8x128xf32, #tpu.memory_space<vmem>>, vector<8x128xf32>,
    %c0_i32_21 = arith.constant 0 : i32
    %28 = arith.cmpi eq, %arg0, %c0_i32_21 : i32
    %29 = arith.extui %28 : i1 to i32
    %c0_i32_22 = arith.constant 0 : i32
    %30 = arith.cmpi ne, %29, %c0_i32_22 : i32
    scf.if %30 {
      %c0_23 = arith.constant 0 : index
      %c0_24 = arith.constant 0 : index
      %31 = vector.load %arg4[%c0_23, %c0_24] : memref<8x128xf32, #tpu.memory_space<vmem>>, vector<8x128xf32>
      %32 = vector.shape_cast %31 : vector<8x128xf32> to vector<1x8x128xf32>
      %cst_25 = arith.constant dense<0.000000e+00> : vector<1xf32>
      %33 = vector.multi_reduction <add>, %32, %cst_25 [1, 2] : vector<1x8x128xf32> to vector<1xf32>
      %34 = vector.shape_cast %33 : vector<1xf32> to vector<1x1x1xf32>
      %35 = vector.extract %34[0, 0, 0] : f32 from vector<1x1x1xf32>
      %c0_26 = arith.constant 0 : index
      %c0_27 = arith.constant 0 : index
      %36 = vector.load %arg5[%c0_26, %c0_27] : memref<8x128xf32, #tpu.memory_space<vmem>>, vector<8x128xf32>
      %37 = vector.shape_cast %36 : vector<8x128xf32> to vector<1x8x128xf32>
      %cst_28 = arith.constant dense<0.000000e+00> : vector<1xf32>
      %38 = vector.multi_reduction <add>, %37, %cst_28 [1, 2] : vector<1x8x128xf32> to vector<1xf32>
      %39 = vector.shape_cast %38 : vector<1xf32> to vector<1x1x1xf32>
      %40 = vector.extract %39[0, 0, 0] : f32 from vector<1x1x1xf32>
      %c0_29 = arith.constant 0 : index
      %c0_30 = arith.constant 0 : index
      %41 = vector.load %arg6[%c0_29, %c0_30] : memref<8x128xf32, #tpu.memory_space<vmem>>, vector<8x128xf32>
      %42 = vector.shape_cast %41 : vector<8x128xf32> to vector<1x8x128xf32>
      %cst_31 = arith.constant dense<0.000000e+00> : vector<1xf32>
      %43 = vector.multi_reduction <add>, %42, %cst_31 [1, 2] : vector<1x8x128xf32> to vector<1xf32>
      %44 = vector.shape_cast %43 : vector<1xf32> to vector<1x1x1xf32>
      %45 = vector.extract %44[0, 0, 0] : f32 from vector<1x1x1xf32>
      %46 = arith.subf %40, %35 : f32
      %47 = arith.subf %45, %35 : f32
      %cst_32 = arith.constant 2.000000e+00 : f32
      %48 = arith.mulf %cst_32, %35 : f32
      %cst_33 = arith.constant 9.99999997E-7 : f32
      %49 = arith.addf %48, %cst_33 : f32
      %cst_34 = arith.constant 2.000000e+00 : f32
      %50 = arith.mulf %cst_34, %35 : f32
      %cst_35 = arith.constant 1.000000e+00 : f32
      %51 = arith.mulf %cst_35, %47 : f32
      %52 = arith.addf %50, %51 : f32
      %53 = arith.addf %52, %46 : f32
      %cst_36 = arith.constant 9.99999997E-7 : f32
      %54 = arith.addf %53, %cst_36 : f32
      %55 = arith.divf %49, %54 : f32
      %cst_37 = arith.constant 1.000000e+00 : f32
      %56 = arith.subf %cst_37, %55 : f32
      %c0_38 = arith.constant 0 : index
      %c0_39 = arith.constant 0 : index
      %57 = memref.load %arg3[%c0_38, %c0_39] : memref<1x1xf32, #tpu.memory_space<smem>>
      memref.store %56, %arg3[%c0_38, %c0_39] : memref<1x1xf32, #tpu.memory_space<smem>>
    } else {
    }
    return
  }
  func.func @transform_0(%arg0: i32) -> (i32, i32) {
    %c0_i32 = arith.constant 0 : i32
    %c0_i32_0 = arith.constant 0 : i32
    return %arg0, %c0_i32 : i32, i32
  }
  func.func @transform_1(%arg0: i32) -> (i32, i32) {
    %c0_i32 = arith.constant 0 : i32
    %c0_i32_0 = arith.constant 0 : i32
    return %arg0, %c0_i32 : i32, i32
  }
  func.func @transform_2(%arg0: i32) -> (i32, i32) {
    %c0_i32 = arith.constant 0 : i32
    %c0_i32_0 = arith.constant 0 : i32
    %c0_i32_1 = arith.constant 0 : i32
    return %c0_i32, %c0_i32_0 : i32, i32
  }
}

</mosaic_0001>

<llo_original>
// kernel: tpu_custom_call.1
$region0: #{tpu_custom_call.1}
  #allocation0 [shape = 'u32[]', space=smem, size = 0x4, offset = 0x4, fixed_abs, tag = 'smem constant byte address 0x4 - core index']
  #allocation1 [shape = 'u32[144,128]{1,0:T(1,128)}', space=vmem, size = 0x12000, scoped, tag = 'internal scratch']
  #allocation2 [shape = 'f32[8,128]{1,0:T(8,128)}', space=vmem, size = 0x1000, scoped, tag = 'scratch operand']
  #allocation3 [shape = 'f32[8,128]{1,0:T(8,128)}', space=vmem, size = 0x1000, scoped, tag = 'scratch operand']
  #allocation4 [shape = 'f32[8,128]{1,0:T(8,128)}', space=vmem, size = 0x1000, scoped, tag = 'scratch operand']
  %s0 = inlined_call_operand.hbm [shape: f32[16,128], index: 0, kind: input, shape index: {}]
  %s1 = inlined_call_operand.hbm [shape: f32[16,128], index: 1, kind: input, shape index: {}]
  %s2 = inlined_call_operand.hbm [shape: f32[1,1], index: 2, kind: output, shape index: {}]
  %s3 = sld [smem:[#allocation0]]
  $region34: #{tpu_custom_call.1} parent=0
    _
  %s5 = ssub.s32 1, %s3
  %s6 = scalar_select 0, %s5, %s3
  $region1: #{tpu_custom_call.1} parent=0
    #allocation5 [shape = 'u8[8192]{0}', space=vmem, size = 0x2000, scoped, tag = 'input window, operand 0, single buffered']
    #allocation6 [shape = 's32[1]{0}', space=sflag, size = 0x4, scoped, tag = 'scoped memory for tpu_custom_call.1']
    #allocation7 [shape = 's32[1]{0}', space=sflag, size = 0x4, scoped, tag = 'scoped memory for tpu_custom_call.1']
    #allocation8 [shape = 'u8[8192]{0}', space=vmem, size = 0x2000, scoped, tag = 'input window, operand 1, single buffered']
    #allocation9 [shape = 's32[1]{0}', space=sflag, size = 0x4, scoped, tag = 'scoped memory for tpu_custom_call.1']
    #allocation10 [shape = 'u8[512]{0}', space=smem, size = 0x200, scoped, tag = 'output window, operand 0, single buffered']
    %7 = vsyncpa [#allocation6], 0
    %8 = vsyncpa [#allocation9], 0
    %9 = vsyncpa [#allocation7], 0
    // Predicated region
    $region2: #{tpu_custom_call.1} parent=1 // pred_check
      _
    $region3: #{tpu_custom_call.1} parent=1 // pred_check_branch
      %11 = sbr.rel (0) target = $region5
    $region4: #{tpu_custom_call.1} parent=1 // pred_region
      %s13 = ssub.s32 256, 256
      %14 = vsyncadd [#allocation6], %s13
      %s15 = sshll.u32 [#allocation5], 4
      %s16 = int_to_ptr.vmem [resolvable:$true] %s15
      %21 = dma.hbm_to_vmem [thread:$0]  %s0, 256, %s16, [#allocation6], 128, 128, 8
    $region5: #{tpu_custom_call.1} parent=1 // pred_fallthru
      _
    // Predicated region
    $region6: #{tpu_custom_call.1} parent=1 // pred_check
      _
    $region7: #{tpu_custom_call.1} parent=1 // pred_check_branch
      %23 = sbr.rel (0) target = $region9
    $region8: #{tpu_custom_call.1} parent=1 // pred_region
      %s25 = ssub.s32 256, 256
      %26 = vsyncadd [#allocation9], %s25
      %s27 = sshll.u32 [#allocation8], 4
      %s28 = int_to_ptr.vmem [resolvable:$true] %s27
      %33 = dma.hbm_to_vmem [thread:$0]  %s1, 256, %s28, [#allocation9], 128, 128, 8
    $region9: #{tpu_custom_call.1} parent=1 // pred_fallthru
      _
    // Predicated region
    $region10: #{tpu_custom_call.1} parent=1 // pred_check
      _
    $region11: #{tpu_custom_call.1} parent=1 // pred_check_branch
      %35 = sbr.rel (0) target = $region13
    $region12: #{tpu_custom_call.1} parent=1 // pred_region
      %36 = dma.done [#allocation6], 256
    $region13: #{tpu_custom_call.1} parent=1 // pred_fallthru
      _
    // Predicated region
    $region14: #{tpu_custom_call.1} parent=1 // pred_check
      _
    $region15: #{tpu_custom_call.1} parent=1 // pred_check_branch
      %38 = sbr.rel (0) target = $region17
    $region16: #{tpu_custom_call.1} parent=1 // pred_region
      %39 = dma.done [#allocation9], 256
    $region17: #{tpu_custom_call.1} parent=1 // pred_fallthru
      _
    %p40 = scmp.eq.s32.totalorder 0, 0
    // Predicated region
    $region18: #{tpu_custom_call.1} parent=1 // pred_check
      %p41 = pneg %p40
    $region19: #{tpu_custom_call.1} parent=1 // pred_check_branch
      %43 = sbr.rel (%p41) target = $region21
    $region20: #{tpu_custom_call.1} parent=1 // pred_region
      %44 = vst [vmem:[#allocation2] sm:$0xff] 0.0
      %45 = vst [vmem:[#allocation3] sm:$0xff] 0.0
      %46 = vst [vmem:[#allocation4] sm:$0xff] 0.0
    $region21: #{tpu_custom_call.1} parent=1 // pred_fallthru
      _
    %v47 = vld [vmem:[#allocation5] sm:$0xff]
    %v48 = vld [vmem:[#allocation5 + $0x8] sm:$0xff]
    %v49 = vld [vmem:[#allocation8] sm:$0xff]
    %v50 = vld [vmem:[#allocation8 + $0x8] sm:$0xff]
    %v51 = vmul.f32 %v47, 0.5
    %v52 = vmul.f32 %v48, 0.5
    %v53 = vtanh.pop %v51
    %v54 = vtanh.pop %v52
    %v55 = vmul.f32 %v53, 0.5
    %v56 = vmul.f32 %v54, 0.5
    %v57 = vadd.f32 %v55, 0.5
    %v58 = vadd.f32 %v56, 0.5
    %v59 = vld [vmem:[#allocation2] sm:$0xff]
    %v60 = vmul.f32 %v57, %v49
    %v61 = vmul.f32 %v58, %v50
    %v62 = vadd.f32 %v60, %v61
    %v63 = vadd.f32 %v59, %v62
    %64 = vst [vmem:[#allocation2] sm:$0xff] %v63
    %v65 = vld [vmem:[#allocation3] sm:$0xff]
    %v66 = vadd.f32 %v57, %v58
    %v67 = vadd.f32 %v65, %v66
    %68 = vst [vmem:[#allocation3] sm:$0xff] %v67
    %v69 = vld [vmem:[#allocation4] sm:$0xff]
    %v70 = vadd.f32 %v49, %v50
    %v71 = vadd.f32 %v69, %v70
    %72 = vst [vmem:[#allocation4] sm:$0xff] %v71
    // Predicated region
    $region22: #{tpu_custom_call.1} parent=1 // pred_check
      %p73 = pneg %p40
    $region23: #{tpu_custom_call.1} parent=1 // pred_check_branch
      %75 = sbr.rel (%p73) target = $region25
    $region24: #{tpu_custom_call.1} parent=1 // pred_region
      %v76 = vld [vmem:[#allocation2] sm:$0xff]
      %77 = vadd.xlane.f32.xlu0 %v76
      %v78 = vpop.xlane.xlu0 %77
      %v79 = vrot.slane %v78, 4
      %v80 = vadd.f32 %v78, %v79
      %v81 = vrot.slane %v80, 2
      %v82 = vadd.f32 %v80, %v81
      %v83 = vrot.slane %v82, 1
      %v84 = vadd.f32 %v82, %v83
      %s85 = vtos %v84
      %v86 = vld [vmem:[#allocation3] sm:$0xff]
      %87 = vadd.xlane.f32.xlu0 %v86
      %v88 = vpop.xlane.xlu0 %87
      %v89 = vrot.slane %v88, 4
      %v90 = vadd.f32 %v88, %v89
      %v91 = vrot.slane %v90, 2
      %v92 = vadd.f32 %v90, %v91
      %v93 = vrot.slane %v92, 1
      %v94 = vadd.f32 %v92, %v93
      %s95 = vtos %v94
      %v96 = vld [vmem:[#allocation4] sm:$0xff]
      %97 = vadd.xlane.f32.xlu0 %v96
      %v98 = vpop.xlane.xlu0 %97
      %v99 = vrot.slane %v98, 4
      %v100 = vadd.f32 %v98, %v99
      %v101 = vrot.slane %v100, 2
      %v102 = vadd.f32 %v100, %v101
      %v103 = vrot.slane %v102, 1
      %v104 = vadd.f32 %v102, %v103
      %s105 = vtos %v104
      %s106 = ssub.f32 %s95, %s85
      %s107 = ssub.f32 %s105, %s85
      %s108 = smul.f32 %s85, 2.0
      %s109 = sadd.f32 %s108, 1e-06
      %s110 = sadd.f32 %s108, %s107
      %s111 = sadd.f32 %s110, %s106
      %s112 = sadd.f32 %s111, 1e-06
      %v113 = vstv %s112
      %v114 = vrcp.pop %v113
      %s115 = vtos %v114
      %s116 = smul.f32 %s109, %s115
      %s117 = ssub.f32 1.0, %s116
      %s118 = scalar_lea.smem [#allocation10], 0
      %119 = sst [smem:[%s118]] %s117
    $region25: #{tpu_custom_call.1} parent=1 // pred_fallthru
      _
    // Predicated region
    $region26: #{tpu_custom_call.1} parent=1 // pred_check
      _
    $region27: #{tpu_custom_call.1} parent=1 // pred_check_branch
      %121 = sbr.rel (0) target = $region29
    $region28: #{tpu_custom_call.1} parent=1 // pred_region
      %s123 = ssub.s32 16, 16
      %124 = vsyncadd [#allocation7], %s123
      %127 = dma.smem_to_hbm [#allocation10], 16, %s2, [#allocation7]
    $region29: #{tpu_custom_call.1} parent=1 // pred_fallthru
      _
    // Predicated region
    $region30: #{tpu_custom_call.1} parent=1 // pred_check
      _
    $region31: #{tpu_custom_call.1} parent=1 // pred_check_branch
      %129 = sbr.rel (0) target = $region33
    $region32: #{tpu_custom_call.1} parent=1 // pred_region
      %130 = dma.done [#allocation7], 16
    $region33: #{tpu_custom_call.1} parent=1 // pred_fallthru
      _
    %131 = sfence
    %132 = vsyncpa [#allocation6], 1
    %133 = vsyncpa [#allocation9], 1
    %134 = vsyncpa [#allocation7], 1

</llo_original>
